<compile_context>
chip_gen: v5e
topology: v5e:2x2
jax: 0.10.0
libtpu: 0.0.40
codegen_flags: <defaults>
</compile_context>

<pallas_src>
import functools
import math

import jax
import jax.numpy as jnp
from jax.experimental import pallas as pl
from jax.experimental.pallas import tpu as pltpu


_ACC_ROWS = 8  # sublane height of the per-partition vector accumulator


def _cdiv(a, b):
    return -(-a // b)


def _round_up(x, m):
    return _cdiv(x, m) * m


def _chip_profile():
    """(two_tensorcores, per-core VMEM capacity in bytes) for the local chip."""
    kind = ""
    try:
        kind = jax.devices()[0].device_kind.lower()
    except Exception:
        pass
    is_v7 = ("v7" in kind) or ("7x" in kind)
    two_tc = is_v7 or ("v4" in kind) or ("v5p" in kind)
    vmem_cap = (64 << 20) if is_v7 else (128 << 20)
    try:  # refine with the trace-time hardware query when available
        cap = getattr(pltpu.get_tpu_info(), "vmem_capacity_bytes", None)
        if cap:
            vmem_cap = min(vmem_cap, int(cap))
    except Exception:
        pass
    return two_tc, vmem_cap


def _kld_kernel(mu_ref, lv_ref, acc_ref, *, chunk_rows, n_chunks, feats,
                block_rows, total_rows, t_steps, needs_mask):
    """Accumulate sum(1 + lv - mu^2 - exp(lv)) of this block into acc_ref."""
    t = pl.program_id(1)  # reduction axis (last grid axis, "arbitrary")

    # Zero the resident vector accumulator at the start of each partition.
    @pl.when(t == 0)
    def _init():
        acc_ref[...] = jnp.zeros_like(acc_ref)

    if needs_mask:
        # Global row offset of this block (unpadded tail rows hold garbage).
        row0 = (pl.program_id(0) * t_steps + t) * block_rows
        # Hoisted once: JAX does not CSE broadcast_in_dim across loop iters.
        rid = jax.lax.broadcasted_iota(jnp.int32, (chunk_rows, feats), 0)

    # vreg-resident accumulator; single VMEM read-modify-write after the loop.
    acc = jnp.zeros((_ACC_ROWS, feats), jnp.float32)
    # Static (fully unrolled) chunk loop -> LLO sees the whole EUP/VPU stream.
    for c in range(n_chunks):
        r0 = c * chunk_rows
        mu = mu_ref[pl.ds(r0, chunk_rows), :].astype(jnp.float32)
        lv = lv_ref[pl.ds(r0, chunk_rows), :].astype(jnp.float32)
        # Elementwise hot path: VPU adds/muls + one EUP exp per element.
        term = 1.0 + lv - mu * mu - jnp.exp(lv)
        if needs_mask:
            # Kill rows beyond the true row count (exact; NaN/garbage safe).
            term = jnp.where(rid < (total_rows - row0 - r0), term, 0.0)
        # Fold (chunk_rows, feats) -> (8, feats): sublane split is layout-free,
        # pure VPU vreg adds, no cross-lane XLU reduce inside the hot loop.
        acc = acc + jnp.sum(
            term.reshape(chunk_rows // _ACC_ROWS, _ACC_ROWS, feats), axis=0)

    acc_ref[0] += acc


def kld_loss(mu, logvar, *, target_block_bytes=None):
    """-0.5 * sum(1 + logvar - mu**2 - exp(logvar)) via a Pallas TPU kernel.

    Accepts f32 or bf16 inputs of any (matching) shape.
    """
    assert mu.shape == logvar.shape, (mu.shape, logvar.shape)
    assert mu.dtype == logvar.dtype, (mu.dtype, logvar.dtype)

    if mu.size == 0:
        return jnp.float32(0.0)

    two_tc, vmem_cap = _chip_profile()
    if target_block_bytes is None:
        # <=4 MiB per input block on 64 MiB/TC parts (v7x), 8 MiB otherwise.
        target_block_bytes = (4 << 20) if vmem_cap <= (64 << 20) else (8 << 20)
    vmem_budget = int(vmem_cap * 3 // 4)

    # --- 2-D working view with zero data movement in the common cases.
    if mu.ndim == 2:
        mu2d, lv2d = mu, logvar                       # no reshape, no copy
    elif mu.ndim > 2:
        rr = math.prod(mu.shape[:-1])
        mu2d = mu.reshape(rr, mu.shape[-1])           # collapse leading dims
        lv2d = logvar.reshape(rr, mu.shape[-1])
    else:  # 0-D / 1-D
        mu2d = mu.reshape(1, -1)
        lv2d = logvar.reshape(1, -1)
    R, D = mu2d.shape

    itemsize = jnp.dtype(mu.dtype).itemsize
    sub = 16 if itemsize < 4 else 8                   # sublane packing unit

    # Degenerate extremely-wide rows: reflow lane-dense so a minimal block
    # still fits VMEM (costs one relayout pass; never hit for typical losses).
    if sub * D * itemsize > 2 * target_block_bytes and (R * D) % 128 == 0:
        mu2d = mu2d.reshape(-1, 128)
        lv2d = lv2d.reshape(-1, 128)
        R, D = mu2d.shape
    # TODO(synk): rows wider than ~2M elements that are not 128-divisible would
    # additionally need lane tiling; not expected for a KL-divergence loss.

    # --- Row tiling: big, VMEM-budget-aware blocks (rows multiple of `sub`).
    raw_rows = max(sub, target_block_bytes // (D * itemsize))
    block_rows = min(_round_up(raw_rows, sub), _round_up(R, sub))
    block_bytes = block_rows * D * itemsize
    # Inner chunking bounds the f32 elementwise temporaries (~0.5 MiB/chunk),
    # capped at 16 statically-unrolled chunks.
    n_chunks = int(min(16, max(1, block_bytes // (512 << 10))))
    chunk_rows = _round_up(_cdiv(block_rows, n_chunks), sub)
    block_rows = chunk_rows * _cdiv(block_rows, chunk_rows)
    n_chunks = block_rows // chunk_rows

    num_blocks = _cdiv(R, block_rows)
    needs_mask = (R % block_rows) != 0                # partial tail block only

    # --- Partition over a leading "parallel" axis only on 2-TC chips and only
    #     when blocks split evenly (no dead / duplicated DMA traffic).
    p_parts = 2 if (two_tc and num_blocks >= 2 and num_blocks % 2 == 0) else 1
    t_steps = num_blocks // p_parts

    # --- Explicit VMEM budget: 2 inputs x 2 buffers + accumulator + f32 temps.
    in_block_bytes = block_rows * D * itemsize
    chunk_f32 = chunk_rows * D * 4
    need = (2 * 2 * in_block_bytes + 2 * _ACC_ROWS * D * 4
            + 6 * chunk_f32 + (4 << 20))
    vmem_limit = int(min(max(need, 32 << 20), vmem_budget))

    kernel = functools.partial(
        _kld_kernel,
        chunk_rows=chunk_rows, n_chunks=n_chunks, feats=D,
        block_rows=block_rows, total_rows=R, t_steps=t_steps,
        needs_mask=needs_mask)

    in_spec = pl.BlockSpec((block_rows, D), lambda p, t: (p * t_steps + t, 0))

    partials = pl.pallas_call(
        kernel,
        out_shape=jax.ShapeDtypeStruct((p_parts, _ACC_ROWS, D), jnp.float32),
        grid_spec=pltpu.PrefetchScalarGridSpec(
            num_scalar_prefetch=0,
            grid=(p_parts, t_steps),
            in_specs=[in_spec, in_spec],
            # Output block index constant along the reduction axis t ->
            # resident VMEM vector accumulator, written back once per partition.
            out_specs=pl.BlockSpec((1, _ACC_ROWS, D), lambda p, t: (p, 0, 0)),
        ),
        compiler_params=pltpu.CompilerParams(
            dimension_semantics=("parallel", "arbitrary"),
            vmem_limit_bytes=vmem_limit,
        ),
    )(mu2d, lv2d)

    # Tiny final reduce (+ -0.5 scale) over the (P, 8, D) partials.
    return -0.5 * jnp.sum(partials)


if __name__ == "__main__":
    key = jax.random.PRNGKey(0)
    k1, k2, k3, k4, k5, k6 = jax.random.split(key, 6)

    # Small VAE-style latent batch: batch=8, latent=32 (natural 2-D, no copies).
    mu = jax.random.normal(k1, (8, 32), dtype=jnp.float32)
    logvar = jax.random.normal(k2, (8, 32), dtype=jnp.float32) * 0.5
    kld = jax.block_until_ready(kld_loss(mu, logvar))
    ref = -0.5 * jnp.sum(1.0 + logvar - mu * mu - jnp.exp(logvar))
    assert jnp.allclose(kld, ref, rtol=2e-5, atol=1e-3), (kld, ref)

    # Odd, non-lane-aligned shape exercises the masked row-tail path (no pad).
    mu2 = jax.random.normal(k3, (7, 37), dtype=jnp.float32)
    lv2 = jax.random.normal(k4, (7, 37), dtype=jnp.float32) * 0.3
    kld2 = jax.block_until_ready(kld_loss(mu2, lv2))
    ref2 = -0.5 * jnp.sum(1.0 + lv2 - mu2 * mu2 - jnp.exp(lv2))
    assert jnp.allclose(kld2, ref2, rtol=2e-5, atol=1e-3), (kld2, ref2)

    # bf16 inputs (kernel upcasts to f32; 16-row sublane packing + masking).
    mu3 = mu.astype(jnp.bfloat16)
    lv3 = logvar.astype(jnp.bfloat16)
    kld3 = jax.block_until_ready(kld_loss(mu3, lv3))
    mu3f, lv3f = mu3.astype(jnp.float32), lv3.astype(jnp.float32)
    ref3 = -0.5 * jnp.sum(1.0 + lv3f - mu3f * mu3f - jnp.exp(lv3f))
    assert jnp.allclose(kld3, ref3, rtol=1e-4, atol=1e-2), (kld3, ref3)

    # Multi-grid-step path: resident accumulator across the reduction axis.
    mu4 = jax.random.normal(k5, (4096, 128), dtype=jnp.float32) * 0.5
    lv4 = jax.random.normal(k6, (4096, 128), dtype=jnp.float32) * 0.2
    kld4 = jax.block_until_ready(kld_loss(mu4, lv4, target_block_bytes=256 * 1024))
    ref4 = -0.5 * jnp.sum(1.0 + lv4 - mu4 * mu4 - jnp.exp(lv4))
    assert jnp.allclose(kld4, ref4, rtol=1e-4, atol=1e-2), (kld4, ref4)

    print("KERNEL_OK")
</pallas_src>

<mosaic_0001>
module attributes {stable_mosaic.version = 11 : i64} {
  func.func @_kld_kernel(%arg0: i32, %arg1: i32, %arg2: memref<8x32xf32, #tpu.memory_space<vmem>>, %arg3: memref<8x32xf32, #tpu.memory_space<vmem>>, %arg4: memref<1x8x32xf32, #tpu.memory_space<vmem>>) attributes {dimension_semantics = [#tpu.dimension_semantics<parallel>, #tpu.dimension_semantics<arbitrary>], iteration_bounds = array<i64: 1, 1>, scalar_prefetch = 0 : i64, scratch_operands = 0 : i64, tpu.core_type = #tpu.core_type<tc>, window_params = [{transform_indices = @transform_0, window_bounds = array<i64: 8, 32>}, {transform_indices = @transform_1, window_bounds = array<i64: 8, 32>}, {transform_indices = @transform_2, window_bounds = array<i64: 1, 8, 32>}]} {
    %c0_i32 = arith.constant 0 : i32
    %0 = arith.cmpi eq, %arg1, %c0_i32 : i32
    %1 = arith.extui %0 : i1 to i32
    %c0_i32_0 = arith.constant 0 : i32
    %2 = arith.cmpi ne, %1, %c0_i32_0 : i32
    scf.if %2 {
      %cst_12 = arith.constant 0.000000e+00 : f32
      %21 = vector.broadcast %cst_12 : f32 to vector<1x8x32xf32>
      %c0_13 = arith.constant 0 : index
      %c0_14 = arith.constant 0 : index
      %c0_15 = arith.constant 0 : index
      %22 = vector.load %arg4[%c0_13, %c0_14, %c0_15] : memref<1x8x32xf32, #tpu.memory_space<vmem>>, vector<1x8x32xf32>
      tpu.vector_store %arg4[%c0_13, %c0_14, %c0_15], %21 {strides = array<i32>} : memref<1x8x32xf32, #tpu.memory_space<vmem>>, vector<1x8x32xf32>,
    } else {
    }
    %cst = arith.constant 0.000000e+00 : f32
    %3 = vector.broadcast %cst : f32 to vector<8x32xf32>
    %c0 = arith.constant 0 : index
    %c0_1 = arith.constant 0 : index
    %4 = vector.load %arg2[%c0, %c0_1] : memref<8x32xf32, #tpu.memory_space<vmem>>, vector<8x32xf32>
    %c0_2 = arith.constant 0 : index
    %c0_3 = arith.constant 0 : index
    %5 = vector.load %arg3[%c0_2, %c0_3] : memref<8x32xf32, #tpu.memory_space<vmem>>, vector<8x32xf32>
    %cst_4 = arith.constant 1.000000e+00 : f32
    %6 = vector.broadcast %cst_4 : f32 to vector<8x32xf32>
    %7 = arith.addf %6, %5 : vector<8x32xf32>
    %8 = arith.mulf %4, %4 : vector<8x32xf32>
    %9 = arith.subf %7, %8 : vector<8x32xf32>
    %10 = math.exp %5 : vector<8x32xf32>
    %11 = arith.subf %9, %10 : vector<8x32xf32>
    %12 = vector.shape_cast %11 : vector<8x32xf32> to vector<1x8x32xf32>
    %cst_5 = arith.constant dense<0.000000e+00> : vector<8x32xf32>
    %13 = vector.multi_reduction <add>, %12, %cst_5 [0] : vector<1x8x32xf32> to vector<8x32xf32>
    %14 = arith.addf %3, %13 : vector<8x32xf32>
    %c0_6 = arith.constant 0 : index
    %c0_7 = arith.constant 0 : index
    %c0_8 = arith.constant 0 : index
    %15 = vector.load %arg4[%c0_6, %c0_7, %c0_8] : memref<1x8x32xf32, #tpu.memory_space<vmem>>, vector<1x8x32xf32>
    %16 = vector.shape_cast %15 : vector<1x8x32xf32> to vector<8x32xf32>
    %17 = arith.addf %16, %14 : vector<8x32xf32>
    %c0_9 = arith.constant 0 : index
    %c0_10 = arith.constant 0 : index
    %c0_11 = arith.constant 0 : index
    %18 = vector.load %arg4[%c0_9, %c0_10, %c0_11] : memref<1x8x32xf32, #tpu.memory_space<vmem>>, vector<1x8x32xf32>
    %19 = vector.shape_cast %18 : vector<1x8x32xf32> to vector<8x32xf32>
    %20 = vector.shape_cast %17 : vector<8x32xf32> to vector<1x8x32xf32>
    tpu.vector_store %arg4[%c0_9, %c0_10, %c0_11], %20 {strides = array<i32>} : memref<1x8x32xf32, #tpu.memory_space<vmem>>, vector<1x8x32xf32>,
    return
  }
  func.func @transform_0(%arg0: i32, %arg1: i32) -> (i32, i32) {
    %c1_i32 = arith.constant 1 : i32
    %0 = arith.muli %arg0, %c1_i32 : i32
    %1 = arith.addi %0, %arg1 : i32
    %c0_i32 = arith.constant 0 : i32
    %c0_i32_0 = arith.constant 0 : i32
    return %1, %c0_i32 : i32, i32
  }
  func.func @transform_1(%arg0: i32, %arg1: i32) -> (i32, i32) {
    %c1_i32 = arith.constant 1 : i32
    %0 = arith.muli %arg0, %c1_i32 : i32
    %1 = arith.addi %0, %arg1 : i32
    %c0_i32 = arith.constant 0 : i32
    %c0_i32_0 = arith.constant 0 : i32
    return %1, %c0_i32 : i32, i32
  }
  func.func @transform_2(%arg0: i32, %arg1: i32) -> (i32, i32, i32) {
    %c0_i32 = arith.constant 0 : i32
    %c0_i32_0 = arith.constant 0 : i32
    %c0_i32_1 = arith.constant 0 : i32
    return %arg0, %c0_i32, %c0_i32_0 : i32, i32, i32
  }
}

</mosaic_0001>

<llo_original>
// kernel: tpu_custom_call.1
$region0: #{tpu_custom_call.1}
  #allocation0 [shape = 'u32[]', space=smem, size = 0x4, offset = 0x4, fixed_abs, tag = 'smem constant byte address 0x4 - core index']
  #allocation1 [shape = 'u32[72,128]{1,0:T(1,128)}', space=vmem, size = 0x9000, scoped, tag = 'internal scratch']
  %s0 = inlined_call_operand.hbm [shape: f32[8,32], index: 0, kind: input, shape index: {}]
  %s1 = inlined_call_operand.hbm [shape: f32[8,32], index: 1, kind: input, shape index: {}]
  %s2 = inlined_call_operand.hbm [shape: f32[1,8,32], index: 2, kind: output, shape index: {}]
  %s3 = sld [smem:[#allocation0]]
  $region30: #{tpu_custom_call.1} parent=0
    _
  %s5 = ssub.s32 1, %s3
  %s6 = scalar_select 0, %s5, %s3
  $region1: #{tpu_custom_call.1} parent=0
    #allocation2 [shape = 'u8[4096]{0}', space=vmem, size = 0x1000, scoped, tag = 'input window, operand 0, single buffered']
    #allocation3 [shape = 's32[1]{0}', space=sflag, size = 0x4, scoped, tag = 'scoped memory for tpu_custom_call.1']
    #allocation4 [shape = 's32[1]{0}', space=sflag, size = 0x4, scoped, tag = 'scoped memory for tpu_custom_call.1']
    #allocation5 [shape = 'u8[4096]{0}', space=vmem, size = 0x1000, scoped, tag = 'input window, operand 1, single buffered']
    #allocation6 [shape = 's32[1]{0}', space=sflag, size = 0x4, scoped, tag = 'scoped memory for tpu_custom_call.1']
    #allocation7 [shape = 'u8[4096]{0}', space=vmem, size = 0x1000, scoped, tag = 'output window, operand 0, single buffered']
    %7 = vsyncpa [#allocation3], 0
    %8 = vsyncpa [#allocation6], 0
    %9 = vsyncpa [#allocation4], 0
    // Predicated region
    $region2: #{tpu_custom_call.1} parent=1 // pred_check
      _
    $region3: #{tpu_custom_call.1} parent=1 // pred_check_branch
      %11 = sbr.rel (0) target = $region5
    $region4: #{tpu_custom_call.1} parent=1 // pred_region
      %s12 = sadd.s32 0, 0
      %14 = vsyncadd [#allocation3], 0
      %s15 = smul.addr %s12, 8
      %s16 = scalar_lea.hbm %s0, %s15
      %s18 = sshll.u32 %s16, 4
      %s19 = int_to_ptr.hbm [resolvable:$true] %s18
      %s20 = sshll.u32 [#allocation2], 4
      %s21 = int_to_ptr.vmem [resolvable:$true] %s20
      %23 = dma.hbm_to_vmem [thread:$0]  %s19, 128, %s21, [#allocation3]
    $region5: #{tpu_custom_call.1} parent=1 // pred_fallthru
      _
    // Predicated region
    $region6: #{tpu_custom_call.1} parent=1 // pred_check
      _
    $region7: #{tpu_custom_call.1} parent=1 // pred_check_branch
      %25 = sbr.rel (0) target = $region9
    $region8: #{tpu_custom_call.1} parent=1 // pred_region
      %s26 = sadd.s32 0, 0
      %28 = vsyncadd [#allocation6], 0
      %s29 = smul.addr %s26, 8
      %s30 = scalar_lea.hbm %s1, %s29
      %s32 = sshll.u32 %s30, 4
      %s33 = int_to_ptr.hbm [resolvable:$true] %s32
      %s34 = sshll.u32 [#allocation5], 4
      %s35 = int_to_ptr.vmem [resolvable:$true] %s34
      %37 = dma.hbm_to_vmem [thread:$0]  %s33, 128, %s35, [#allocation6]
    $region9: #{tpu_custom_call.1} parent=1 // pred_fallthru
      _
    // Predicated region
    $region10: #{tpu_custom_call.1} parent=1 // pred_check
      _
    $region11: #{tpu_custom_call.1} parent=1 // pred_check_branch
      %39 = sbr.rel (0) target = $region13
    $region12: #{tpu_custom_call.1} parent=1 // pred_region
      %41 = dma.done [#allocation3], 128
    $region13: #{tpu_custom_call.1} parent=1 // pred_fallthru
      _
    // Predicated region
    $region14: #{tpu_custom_call.1} parent=1 // pred_check
      _
    $region15: #{tpu_custom_call.1} parent=1 // pred_check_branch
      %43 = sbr.rel (0) target = $region17
    $region16: #{tpu_custom_call.1} parent=1 // pred_region
      %45 = dma.done [#allocation6], 128
    $region17: #{tpu_custom_call.1} parent=1 // pred_fallthru
      _
    %s46 = sadd.s32 0, 0
    %s47 = sadd.s32 0, 0
    %p48 = scmp.eq.s32.totalorder 0, 0
    // Predicated region
    $region18: #{tpu_custom_call.1} parent=1 // pred_check
      %p49 = pneg %p48
    $region19: #{tpu_custom_call.1} parent=1 // pred_check_branch
      %51 = sbr.rel (%p49) target = $region21
    $region20: #{tpu_custom_call.1} parent=1 // pred_region
      %vm52 = vcmask 261120
      %53 = vst.msk [vmem:[#allocation7] sm:$0xff] %vm52, 0.0
    $region21: #{tpu_custom_call.1} parent=1 // pred_fallthru
      _
    %v54 = vld [vmem:[#allocation2] sm:$0xff]
    %v55 = vld [vmem:[#allocation5] sm:$0xff]
    %v56 = vadd.f32 %v55, 1.0
    %v57 = vmul.f32 %v54, %v54
    %v58 = vsub.f32 %v56, %v57
    %v59 = vmul.f32 %v55, 1.442695
    %v60 = vpow.pop %v59
    %v61 = vsub.f32 %v58, %v60
    %v62 = vadd.f32 %v61, 0.0
    %v63 = vadd.f32 %v62, 0.0
    %v64 = vld [vmem:[#allocation7] sm:$0xff]
    %v65 = vadd.f32 %v64, %v63
    %vm66 = vcmask 261120
    %67 = vst.msk [vmem:[#allocation7] sm:$0xff] %vm66, %v65
    // Predicated region
    $region22: #{tpu_custom_call.1} parent=1 // pred_check
      _
    $region23: #{tpu_custom_call.1} parent=1 // pred_check_branch
      %69 = sbr.rel (0) target = $region25
    $region24: #{tpu_custom_call.1} parent=1 // pred_region
      %71 = vsyncadd [#allocation4], 0
      %s73 = sshll.u32 [#allocation7], 4
      %s74 = int_to_ptr.vmem [resolvable:$true] %s73
      %s75 = sshll.u32 %s2, 4
      %s76 = int_to_ptr.hbm [resolvable:$true] %s75
      %78 = dma.vmem_to_hbm [thread:$0]  %s74, 128, %s76, [#allocation4]
    $region25: #{tpu_custom_call.1} parent=1 // pred_fallthru
      _
    // Predicated region
    $region26: #{tpu_custom_call.1} parent=1 // pred_check
      _
    $region27: #{tpu_custom_call.1} parent=1 // pred_check_branch
      %80 = sbr.rel (0) target = $region29
    $region28: #{tpu_custom_call.1} parent=1 // pred_region
      %82 = dma.done [#allocation4], 128
    $region29: #{tpu_custom_call.1} parent=1 // pred_fallthru
      _
    %83 = vsyncpa [#allocation3], 1
    %84 = vsyncpa [#allocation6], 1
    %85 = vsyncpa [#allocation4], 1

</llo_original>
